<compile_context>
chip_gen: v7x
topology: tpu7x:2x2x1
jax: 0.10.0
libtpu: 0.0.40
codegen_flags: <defaults>
</compile_context>

<pallas_src>
import jax
import jax.numpy as jnp
from jax.experimental import pallas as pl
from jax.experimental.pallas import tpu as pltpu


def _round_up(n, m):
    return ((n + m - 1) // m) * m


# ---------------------------------------------------------------------------
# Kernel
# ---------------------------------------------------------------------------
def dqn_fused_kernel(
    x_ref,                 # (TB, S)        compute_dtype
    w1_ref, b1_ref,        # (S, H) cd, (1, H) f32
    wh1_ref, bh1_ref,      # (H, 512) cd, (1, 512) f32      fused fc_value|fc_advantages
    wh2_ref, bh2_ref,      # (512, A_pad) cd, (1, A_pad) f32 fused dueling head (mean folded in)
    q_ref,                 # (TB, A_pad)    f32
):
    x = x_ref[...]

    # fc1 + ReLU  (MXU matmul, f32 accumulate; epilogue stays in f32)
    h = jnp.dot(x, w1_ref[...], preferred_element_type=jnp.float32) + b1_ref[...]
    h = jnp.maximum(h, 0.0).astype(wh1_ref.dtype)

    # fused fc_value | fc_advantages  -> one 512-wide matmul + ReLU
    y = jnp.dot(h, wh1_ref[...], preferred_element_type=jnp.float32) + bh1_ref[...]
    y = jnp.maximum(y, 0.0).astype(wh2_ref.dtype)

    # fused dueling head: Q = V + A - mean(A) expressed as a single matmul + bias
    q = jnp.dot(y, wh2_ref[...], preferred_element_type=jnp.float32) + bh2_ref[...]
    q_ref[...] = q.astype(q_ref.dtype)


# ---------------------------------------------------------------------------
# Host-side parameter fusion (one-time transform, preserves forward semantics)
# ---------------------------------------------------------------------------
def fuse_params(p, action_dim, lane_pad=128):
    # head first layers: [fc_value | fc_advantages]
    wh1 = jnp.concatenate([p["wv1"], p["wa1"]], axis=1)            # (H, 512)
    bh1 = jnp.concatenate([p["bv1"], p["ba1"]], axis=1)            # (1, 512)

    # fold the dueling mean into the advantage head
    wa2_c = p["wa2"] - jnp.mean(p["wa2"], axis=1, keepdims=True)   # (256, A)
    ba2_c = p["ba2"] - jnp.mean(p["ba2"])                          # (1, A)

    # broadcast the value head across actions and stack -> single (512, A) head
    wv2_b = jnp.broadcast_to(p["wv2"], (p["wv2"].shape[0], action_dim))  # (256, A)
    wh2 = jnp.concatenate([wv2_b, wa2_c], axis=0)                  # (512, A)
    bh2 = p["bv2"] + ba2_c                                         # (1, A)

    # lane-dense output: pad action dim up to a multiple of 128
    a_pad = _round_up(action_dim, lane_pad)
    wh2 = jnp.pad(wh2, ((0, 0), (0, a_pad - action_dim)))
    bh2 = jnp.pad(bh2, ((0, 0), (0, a_pad - action_dim)))

    return dict(w1=p["w1"], b1=p["b1"], wh1=wh1, bh1=bh1, wh2=wh2, bh2=bh2)


# ---------------------------------------------------------------------------
# Wrapper
# ---------------------------------------------------------------------------
def dqn_forward(x, fused, action_dim, *, block_b=512, compute_dtype=jnp.float32):
    """x: (B, state_dim) f32. Returns Q: (B, action_dim) f32."""
    B, S = x.shape
    H = fused["w1"].shape[1]
    H2 = fused["wh1"].shape[1]          # 512
    A_pad = fused["wh2"].shape[1]

    # batch tile: multiple of 8 sublanes, capped by block_b (keeps v7x's
    # smaller VMEM comfortable even at big batches)
    TB = _round_up(min(block_b, _round_up(B, 8)), 8)
    Bp = _round_up(B, TB)
    if Bp != B:
        x = jnp.pad(x, ((0, Bp - B), (0, 0)))

    # MXU inputs in compute_dtype (bf16 halves HBM/vreg traffic on v6e/v7x);
    # biases stay f32 so the VPU epilogue is f32 everywhere (v5e-safe).
    x = x.astype(compute_dtype)
    w1 = fused["w1"].astype(compute_dtype)
    wh1 = fused["wh1"].astype(compute_dtype)
    wh2 = fused["wh2"].astype(compute_dtype)
    b1 = fused["b1"].astype(jnp.float32)
    bh1 = fused["bh1"].astype(jnp.float32)
    bh2 = fused["bh2"].astype(jnp.float32)

    grid = (Bp // TB,)
    q_pad = pl.pallas_call(
        dqn_fused_kernel,
        out_shape=jax.ShapeDtypeStruct((Bp, A_pad), jnp.float32),
        grid=grid,
        in_specs=[
            pl.BlockSpec((TB, S), lambda i: (i, 0)),      # x: tiled on batch
            pl.BlockSpec((S, H), lambda i: (0, 0)),       # weights: VMEM-resident
            pl.BlockSpec((1, H), lambda i: (0, 0)),
            pl.BlockSpec((H, H2), lambda i: (0, 0)),
            pl.BlockSpec((1, H2), lambda i: (0, 0)),
            pl.BlockSpec((H2, A_pad), lambda i: (0, 0)),
            pl.BlockSpec((1, A_pad), lambda i: (0, 0)),
        ],
        out_specs=pl.BlockSpec((TB, A_pad), lambda i: (i, 0)),
        compiler_params=pltpu.CompilerParams(
            dimension_semantics=("parallel",),            # megacore on v7x
        ),
    )(x, w1, b1, wh1, bh1, wh2, bh2)

    return q_pad[:B, :action_dim]


# ---------------------------------------------------------------------------
# Parameter init (PyTorch nn.Linear-style) and pure-JAX reference
# ---------------------------------------------------------------------------
def init_params(key, state_dim, action_dim, hidden_dim=256):
    def linear(k, fan_in, fan_out):
        kw, kb = jax.random.split(k)
        bound = 1.0 / jnp.sqrt(jnp.float32(fan_in))
        w = jax.random.uniform(kw, (fan_in, fan_out), jnp.float32, -bound, bound)
        b = jax.random.uniform(kb, (1, fan_out), jnp.float32, -bound, bound)
        return w, b

    k1, k2, k3, k4, k5 = jax.random.split(key, 5)
    w1, b1 = linear(k1, state_dim, hidden_dim)
    wv1, bv1 = linear(k2, hidden_dim, 256)
    wv2, bv2 = linear(k3, 256, 1)
    wa1, ba1 = linear(k4, hidden_dim, 256)
    wa2, ba2 = linear(k5, 256, action_dim)
    return dict(w1=w1, b1=b1, wv1=wv1, bv1=bv1, wv2=wv2, bv2=bv2,
                wa1=wa1, ba1=ba1, wa2=wa2, ba2=ba2)


def dqn_forward_ref(x, p):
    """Pure-JAX reference of the PyTorch forward (dueling path)."""
    h = jax.nn.relu(x @ p["w1"] + p["b1"])
    v = jax.nn.relu(h @ p["wv1"] + p["bv1"])
    V = v @ p["wv2"] + p["bv2"]
    a = jax.nn.relu(h @ p["wa1"] + p["ba1"])
    A = a @ p["wa2"] + p["ba2"]
    return V + A - jnp.mean(A, axis=1, keepdims=True)


# TODO(synk): the is_dueling_dqn_enabled=False branch (single output Linear) is
# not implemented; this kernel covers the default dueling configuration.

if __name__ == "__main__":
    key = jax.random.PRNGKey(0)
    kx, kp, kx2 = jax.random.split(key, 3)

    # Small shapes consistent with the module: state_dim=16, action_dim=8,
    # hidden_dim=32 (the dueling head internal width stays at 256 as in __init__).
    B, STATE_DIM, ACTION_DIM, HIDDEN_DIM = 2, 16, 8, 32

    raw = init_params(kp, STATE_DIM, ACTION_DIM, HIDDEN_DIM)
    fused = fuse_params(raw, ACTION_DIM)

    # f32 path, tiny batch (padded to one 8-row tile)
    x = jax.random.normal(kx, (B, STATE_DIM), jnp.float32)
    q = jax.block_until_ready(dqn_forward(x, fused, ACTION_DIM))
    q_ref = dqn_forward_ref(x, raw)
    assert q.shape == (B, ACTION_DIM)
    assert jnp.allclose(q, q_ref, atol=1e-4, rtol=1e-4), "f32 mismatch vs JAX reference"

    # f32 path, multi-tile batch grid (3 batch tiles of 16 rows)
    B2 = 48
    x2 = jax.random.normal(kx2, (B2, STATE_DIM), jnp.float32)
    q2 = jax.block_until_ready(dqn_forward(x2, fused, ACTION_DIM, block_b=16))
    q2_ref = dqn_forward_ref(x2, raw)
    assert jnp.allclose(q2, q2_ref, atol=1e-4, rtol=1e-4), "gridded f32 mismatch"

    # bf16 MXU path (f32 accumulation + f32 epilogue), loose tolerance
    q2_bf16 = jax.block_until_ready(
        dqn_forward(x2, fused, ACTION_DIM, block_b=16, compute_dtype=jnp.bfloat16))
    assert jnp.allclose(q2_bf16, q2_ref, atol=5e-2, rtol=5e-2), "bf16 mismatch"

    print("KERNEL_OK")
</pallas_src>

<mosaic_0001>
module attributes {stable_mosaic.version = 11 : i64} {
  func.func @dqn_fused_kernel(%arg0: i32, %arg1: memref<8x16xf32, #tpu.memory_space<vmem>>, %arg2: memref<16x32xf32, #tpu.memory_space<vmem>>, %arg3: memref<1x32xf32, #tpu.memory_space<vmem>>, %arg4: memref<32x512xf32, #tpu.memory_space<vmem>>, %arg5: memref<1x512xf32, #tpu.memory_space<vmem>>, %arg6: memref<512x128xf32, #tpu.memory_space<vmem>>, %arg7: memref<1x128xf32, #tpu.memory_space<vmem>>, %arg8: memref<8x128xf32, #tpu.memory_space<vmem>>) attributes {dimension_semantics = [#tpu.dimension_semantics<parallel>], iteration_bounds = array<i64: 1>, scalar_prefetch = 0 : i64, scratch_operands = 0 : i64, tpu.core_type = #tpu.core_type<tc>, window_params = [{transform_indices = @transform_0, window_bounds = array<i64: 8, 16>}, {pipeline_mode = #tpu.pipeline_mode<synchronous>, transform_indices = @transform_1, window_bounds = array<i64: 16, 32>}, {pipeline_mode = #tpu.pipeline_mode<synchronous>, transform_indices = @transform_2, window_bounds = array<i64: 1, 32>}, {pipeline_mode = #tpu.pipeline_mode<synchronous>, transform_indices = @transform_3, window_bounds = array<i64: 32, 512>}, {pipeline_mode = #tpu.pipeline_mode<synchronous>, transform_indices = @transform_4, window_bounds = array<i64: 1, 512>}, {pipeline_mode = #tpu.pipeline_mode<synchronous>, transform_indices = @transform_5, window_bounds = array<i64: 512, 128>}, {pipeline_mode = #tpu.pipeline_mode<synchronous>, transform_indices = @transform_6, window_bounds = array<i64: 1, 128>}, {transform_indices = @transform_7, window_bounds = array<i64: 8, 128>}]} {
    %c0 = arith.constant 0 : index
    %c0_0 = arith.constant 0 : index
    %0 = vector.load %arg1[%c0, %c0_0] : memref<8x16xf32, #tpu.memory_space<vmem>>, vector<8x16xf32>
    %c0_1 = arith.constant 0 : index
    %c0_2 = arith.constant 0 : index
    %1 = vector.load %arg2[%c0_1, %c0_2] : memref<16x32xf32, #tpu.memory_space<vmem>>, vector<16x32xf32>
    %cst = arith.constant dense<0.000000e+00> : vector<8x32xf32>
    %2 = tpu.matmul %0, %1, %cst {dimension_numbers = #tpu.dot_dimension_numbers<[1], [0], [0], [1], [0, 0, 1, 1], [], []>} : vector<8x16xf32>, vector<16x32xf32>, vector<8x32xf32> -> vector<8x32xf32>
    %c0_3 = arith.constant 0 : index
    %c0_4 = arith.constant 0 : index
    %3 = vector.load %arg3[%c0_3, %c0_4] : memref<1x32xf32, #tpu.memory_space<vmem>>, vector<1x32xf32>
    %4 = vector.broadcast %3 : vector<1x32xf32> to vector<8x32xf32>
    %5 = arith.addf %2, %4 : vector<8x32xf32>
    %cst_5 = arith.constant 0.000000e+00 : f32
    %6 = vector.broadcast %cst_5 : f32 to vector<8x32xf32>
    %7 = arith.maximumf %5, %6 : vector<8x32xf32>
    %c0_6 = arith.constant 0 : index
    %c0_7 = arith.constant 0 : index
    %8 = vector.load %arg4[%c0_6, %c0_7] : memref<32x512xf32, #tpu.memory_space<vmem>>, vector<32x512xf32>
    %cst_8 = arith.constant dense<0.000000e+00> : vector<8x512xf32>
    %9 = tpu.matmul %7, %8, %cst_8 {dimension_numbers = #tpu.dot_dimension_numbers<[1], [0], [0], [1], [0, 0, 1, 1], [], []>} : vector<8x32xf32>, vector<32x512xf32>, vector<8x512xf32> -> vector<8x512xf32>
    %c0_9 = arith.constant 0 : index
    %c0_10 = arith.constant 0 : index
    %10 = vector.load %arg5[%c0_9, %c0_10] : memref<1x512xf32, #tpu.memory_space<vmem>>, vector<1x512xf32>
    %11 = vector.broadcast %10 : vector<1x512xf32> to vector<8x512xf32>
    %12 = arith.addf %9, %11 : vector<8x512xf32>
    %cst_11 = arith.constant 0.000000e+00 : f32
    %13 = vector.broadcast %cst_11 : f32 to vector<8x512xf32>
    %14 = arith.maximumf %12, %13 : vector<8x512xf32>
    %c0_12 = arith.constant 0 : index
    %c0_13 = arith.constant 0 : index
    %15 = vector.load %arg6[%c0_12, %c0_13] : memref<512x128xf32, #tpu.memory_space<vmem>>, vector<512x128xf32>
    %cst_14 = arith.constant dense<0.000000e+00> : vector<8x128xf32>
    %16 = tpu.matmul %14, %15, %cst_14 {dimension_numbers = #tpu.dot_dimension_numbers<[1], [0], [0], [1], [0, 0, 1, 1], [], []>} : vector<8x512xf32>, vector<512x128xf32>, vector<8x128xf32> -> vector<8x128xf32>
    %c0_15 = arith.constant 0 : index
    %c0_16 = arith.constant 0 : index
    %17 = vector.load %arg7[%c0_15, %c0_16] : memref<1x128xf32, #tpu.memory_space<vmem>>, vector<1x128xf32>
    %18 = vector.broadcast %17 : vector<1x128xf32> to vector<8x128xf32>
    %19 = arith.addf %16, %18 : vector<8x128xf32>
    %c0_17 = arith.constant 0 : index
    %c0_18 = arith.constant 0 : index
    %20 = vector.load %arg8[%c0_17, %c0_18] : memref<8x128xf32, #tpu.memory_space<vmem>>, vector<8x128xf32>
    tpu.vector_store %arg8[%c0_17, %c0_18], %19 {strides = array<i32>} : memref<8x128xf32, #tpu.memory_space<vmem>>, vector<8x128xf32>,
    return
  }
  func.func @transform_0(%arg0: i32) -> (i32, i32) {
    %c0_i32 = arith.constant 0 : i32
    %c0_i32_0 = arith.constant 0 : i32
    return %arg0, %c0_i32 : i32, i32
  }
  func.func @transform_1(%arg0: i32) -> (i32, i32) {
    %c0_i32 = arith.constant 0 : i32
    %c0_i32_0 = arith.constant 0 : i32
    %c0_i32_1 = arith.constant 0 : i32
    return %c0_i32, %c0_i32_0 : i32, i32
  }
  func.func @transform_2(%arg0: i32) -> (i32, i32) {
    %c0_i32 = arith.constant 0 : i32
    %c0_i32_0 = arith.constant 0 : i32
    %c0_i32_1 = arith.constant 0 : i32
    return %c0_i32, %c0_i32_0 : i32, i32
  }
  func.func @transform_3(%arg0: i32) -> (i32, i32) {
    %c0_i32 = arith.constant 0 : i32
    %c0_i32_0 = arith.constant 0 : i32
    %c0_i32_1 = arith.constant 0 : i32
    return %c0_i32, %c0_i32_0 : i32, i32
  }
  func.func @transform_4(%arg0: i32) -> (i32, i32) {
    %c0_i32 = arith.constant 0 : i32
    %c0_i32_0 = arith.constant 0 : i32
    %c0_i32_1 = arith.constant 0 : i32
    return %c0_i32, %c0_i32_0 : i32, i32
  }
  func.func @transform_5(%arg0: i32) -> (i32, i32) {
    %c0_i32 = arith.constant 0 : i32
    %c0_i32_0 = arith.constant 0 : i32
    %c0_i32_1 = arith.constant 0 : i32
    return %c0_i32, %c0_i32_0 : i32, i32
  }
  func.func @transform_6(%arg0: i32) -> (i32, i32) {
    %c0_i32 = arith.constant 0 : i32
    %c0_i32_0 = arith.constant 0 : i32
    %c0_i32_1 = arith.constant 0 : i32
    return %c0_i32, %c0_i32_0 : i32, i32
  }
  func.func @transform_7(%arg0: i32) -> (i32, i32) {
    %c0_i32 = arith.constant 0 : i32
    %c0_i32_0 = arith.constant 0 : i32
    return %arg0, %c0_i32 : i32, i32
  }
}

</mosaic_0001>

<llo_original>
// kernel: tpu_custom_call.1
$region0: #{tpu_custom_call.1}
  #allocation0 [shape = 'u32[]', space=smem, size = 0x4, offset = 0x4, fixed_abs, tag = 'smem constant byte address 0x4 - core index']
  #allocation1 [shape = 'u32[144,128]{1,0:T(1,128)}', space=vmem, size = 0x12000, scoped, tag = 'internal scratch']
  %s0 = inlined_call_operand.hbm [shape: f32[8,16], index: 0, kind: input, shape index: {}]
  %s1 = inlined_call_operand.hbm [shape: f32[16,32], index: 1, kind: input, shape index: {}]
  %s2 = inlined_call_operand.vmem [shape: f32[1,32], index: 2, kind: input, shape index: {}]
  %s3 = inlined_call_operand.hbm [shape: f32[32,512], index: 3, kind: input, shape index: {}]
  %s4 = inlined_call_operand.vmem [shape: f32[1,512], index: 4, kind: input, shape index: {}]
  %s5 = inlined_call_operand.hbm [shape: f32[512,128], index: 5, kind: input, shape index: {}]
  %s6 = inlined_call_operand.vmem [shape: f32[1,128], index: 6, kind: input, shape index: {}]
  %s7 = inlined_call_operand.hbm [shape: f32[8,128], index: 7, kind: output, shape index: {}]
  %s8 = sld [smem:[#allocation0]]
  $region54: #{tpu_custom_call.1} parent=0
    _
  %s10 = ssub.s32 1, %s8
  %s11 = scalar_select 0, %s10, %s8
  $region1: #{tpu_custom_call.1} parent=0
    #allocation2 [shape = 'u8[4096]{0}', space=vmem, size = 0x1000, scoped, tag = 'input window, operand 0, single buffered']
    #allocation3 [shape = 's32[1]{0}', space=sflag, size = 0x4, scoped, tag = 'scoped memory for tpu_custom_call.1']
    #allocation4 [shape = 's32[1]{0}', space=sflag, size = 0x4, scoped, tag = 'scoped memory for tpu_custom_call.1']
    #allocation5 [shape = 'u8[8192]{0}', space=vmem, size = 0x2000, scoped, tag = 'input window, operand 1, single buffered']
    #allocation6 [shape = 's32[1]{0}', space=sflag, size = 0x4, scoped, tag = 'scoped memory for tpu_custom_call.1']
    #allocation7 [shape = 'u8[65536]{0}', space=vmem, size = 0x10000, scoped, tag = 'input window, operand 3, single buffered']
    #allocation8 [shape = 'u8[262144]{0}', space=vmem, size = 0x40000, scoped, tag = 'input window, operand 5, single buffered']
    #allocation9 [shape = 's32[1]{0}', space=sflag, size = 0x4, scoped, tag = 'scoped memory for tpu_custom_call.1']
    #allocation10 [shape = 'u8[4096]{0}', space=vmem, size = 0x1000, scoped, tag = 'output window, operand 0, single buffered']
    %12 = vsyncpa [#allocation3], 0
    %13 = vsyncpa [#allocation6], 0
    %14 = vsyncpa [#allocation9], 0
    %15 = vsyncpa [#allocation4], 0
    // Predicated region
    $region2: #{tpu_custom_call.1} parent=1 // pred_check
      _
    $region3: #{tpu_custom_call.1} parent=1 // pred_check_branch
      %17 = sbr.rel (0) target = $region5
    $region4: #{tpu_custom_call.1} parent=1 // pred_region
      %s19 = ssub.s32 128, 128
      %20 = vsyncadd [#allocation3], %s19
      %s22 = sshll.u32 [#allocation2], 4
      %s23 = int_to_ptr.vmem [resolvable:$true] %s22
      %25 = dma.hbm_to_vmem [thread:$0]  %s0, 128, %s23, [#allocation3]
    $region5: #{tpu_custom_call.1} parent=1 // pred_fallthru
      _
    // Predicated region
    $region6: #{tpu_custom_call.1} parent=1 // pred_check
      _
    $region7: #{tpu_custom_call.1} parent=1 // pred_check_branch
      %27 = sbr.rel (0) target = $region9
    $region8: #{tpu_custom_call.1} parent=1 // pred_region
      %s29 = ssub.s32 256, 256
      %30 = vsyncadd [#allocation6], %s29
      %s31 = sshll.u32 [#allocation5], 4
      %s32 = int_to_ptr.vmem [resolvable:$true] %s31
      %37 = dma.hbm_to_vmem [thread:$0]  %s1, 256, %s32, [#allocation6], 128, 128, 8
    $region9: #{tpu_custom_call.1} parent=1 // pred_fallthru
      _
    // Predicated region
    $region10: #{tpu_custom_call.1} parent=1 // pred_check
      _
    $region11: #{tpu_custom_call.1} parent=1 // pred_check_branch
      %39 = sbr.rel (0) target = $region13
    $region12: #{tpu_custom_call.1} parent=1 // pred_region
      _
    $region13: #{tpu_custom_call.1} parent=1 // pred_fallthru
      _
    // Predicated region
    $region14: #{tpu_custom_call.1} parent=1 // pred_check
      _
    $region15: #{tpu_custom_call.1} parent=1 // pred_check_branch
      %41 = sbr.rel (0) target = $region17
    $region16: #{tpu_custom_call.1} parent=1 // pred_region
      %s43 = ssub.s32 2048, 2048
      %44 = vsyncadd [#allocation6], %s43
      %s45 = sshll.u32 [#allocation7], 4
      %s46 = int_to_ptr.vmem [resolvable:$true] %s45
      %51 = dma.hbm_to_vmem [thread:$0]  %s3, 2048, %s46, [#allocation6], 512, 512, 32
    $region17: #{tpu_custom_call.1} parent=1 // pred_fallthru
      _
    // Predicated region
    $region18: #{tpu_custom_call.1} parent=1 // pred_check
      _
    $region19: #{tpu_custom_call.1} parent=1 // pred_check_branch
      %53 = sbr.rel (0) target = $region21
    $region20: #{tpu_custom_call.1} parent=1 // pred_region
      _
    $region21: #{tpu_custom_call.1} parent=1 // pred_fallthru
      _
    // Predicated region
    $region22: #{tpu_custom_call.1} parent=1 // pred_check
      _
    $region23: #{tpu_custom_call.1} parent=1 // pred_check_branch
      %55 = sbr.rel (0) target = $region25
    $region24: #{tpu_custom_call.1} parent=1 // pred_region
      %s57 = ssub.s32 8192, 8192
      %58 = vsyncadd [#allocation9], %s57
      %s59 = sshll.u32 [#allocation8], 4
      %s60 = int_to_ptr.vmem [resolvable:$true] %s59
      %65 = dma.hbm_to_vmem [thread:$0]  %s5, 8192, %s60, [#allocation9], 128, 128, 8
    $region25: #{tpu_custom_call.1} parent=1 // pred_fallthru
      _
    // Predicated region
    $region26: #{tpu_custom_call.1} parent=1 // pred_check
      _
    $region27: #{tpu_custom_call.1} parent=1 // pred_check_branch
      %67 = sbr.rel (0) target = $region29
    $region28: #{tpu_custom_call.1} parent=1 // pred_region
      _
    $region29: #{tpu_custom_call.1} parent=1 // pred_fallthru
      _
    // Predicated region
    $region30: #{tpu_custom_call.1} parent=1 // pred_check
      _
    $region31: #{tpu_custom_call.1} parent=1 // pred_check_branch
      %69 = sbr.rel (0) target = $region33
    $region32: #{tpu_custom_call.1} parent=1 // pred_region
      %70 = dma.done [#allocation3], 128
    $region33: #{tpu_custom_call.1} parent=1 // pred_fallthru
      _
    // Predicated region
    $region34: #{tpu_custom_call.1} parent=1 // pred_check
      _
    $region35: #{tpu_custom_call.1} parent=1 // pred_check_branch
      %72 = sbr.rel (0) target = $region37
    $region36: #{tpu_custom_call.1} parent=1 // pred_region
      %73 = dma.done [#allocation6], 256
    $region37: #{tpu_custom_call.1} parent=1 // pred_fallthru
      _
    // Predicated region
    $region38: #{tpu_custom_call.1} parent=1 // pred_check
      _
    $region39: #{tpu_custom_call.1} parent=1 // pred_check_branch
      %75 = sbr.rel (0) target = $region41
    $region40: #{tpu_custom_call.1} parent=1 // pred_region
      %76 = dma.done [#allocation6], 2048
    $region41: #{tpu_custom_call.1} parent=1 // pred_fallthru
      _
    // Predicated region
    $region42: #{tpu_custom_call.1} parent=1 // pred_check
      _
    $region43: #{tpu_custom_call.1} parent=1 // pred_check_branch
      %78 = sbr.rel (0) target = $region45
    $region44: #{tpu_custom_call.1} parent=1 // pred_region
      %79 = dma.done [#allocation9], 8192
    $region45: #{tpu_custom_call.1} parent=1 // pred_fallthru
      _
    %v80 = vld [vmem:[#allocation2] sm:$0xff]
    %v81 = vld [vmem:[#allocation5] sm:$0xff]
    %v82 = vld [vmem:[#allocation5 + $0x8] sm:$0xff]
    %v83 = vld [vmem:[%s2] sm:$0x1]
    %v85 = vlaneseq
    %v86 = vshrl.u32 %v85, 7
    %v87 = vsub.s32 0, %v86
    %v88 = vrot.slane %v83, %v87
    %vm90 = vcmask 130048
    %v92 = vsel %vm90, %v80, 0
    %94 = vmatprep.subr.mxu0 0.0
    %95 = vmatpush1.msra.mxu0 %v81
    %96 = vmatprep.subr.mxu0 0.0
    %97 = vmatpush1.msra.mxu0 %v82
    %98 = vmatprep.subr.mxu0 0.0
    %99 = vmatpush1.msra.mxu0 0.0
    %100 = vmatprep.subr.mxu0 0.0
    %101 = vmatpush1.msra.mxu0 0.0
    %102 = vmatprep.subr.mxu0 0.0
    %103 = vmatpush1.msra.mxu0 0.0
    %104 = vmatprep.subr.mxu0 0.0
    %105 = vmatpush1.msra.mxu0 0.0
    %106 = vmatprep.subr.mxu0 0.0
    %107 = vmatpush1.msra.mxu0 0.0
    %108 = vmatprep.subr.mxu0 0.0
    %109 = vmatpush1.msra.mxu0 0.0
    %110 = vmatprep.subr.mxu0 0.0
    %111 = vmatpush1.msra.mxu0 0.0
    %112 = vmatprep.subr.mxu0 0.0
    %113 = vmatpush1.msra.mxu0 0.0
    %114 = vmatprep.subr.mxu0 0.0
    %115 = vmatpush1.msra.mxu0 0.0
    %116 = vmatprep.subr.mxu0 0.0
    %117 = vmatpush1.msra.mxu0 0.0
    %118 = vmatprep.subr.mxu0 0.0
    %119 = vmatpush1.msra.mxu0 0.0
    %120 = vmatprep.subr.mxu0 0.0
    %121 = vmatpush1.msra.mxu0 0.0
    %122 = vmatprep.subr.mxu0 0.0
    %123 = vmatpush1.msra.mxu0 0.0
    %124 = vmatprep.subr.mxu0 0.0
    %125 = vmatpush1.msra.mxu0 0.0
    %126 = vmatprep.subr.mxu0 0.0
    %127 = vmatpush1.msra.mxu0 0.0
    %128 = vmatprep.subr.mxu0 0.0
    %129 = vmatpush1.msra.mxu0 0.0
    %130 = vmatprep.subr.mxu0 0.0
    %131 = vmatpush1.msra.mxu0 0.0
    %132 = vmatprep.subr.mxu0 0.0
    %133 = vmatpush1.msra.mxu0 0.0
    %134 = vmatprep.subr.mxu0 0.0
    %135 = vmatpush1.msra.mxu0 0.0
    %136 = vmatprep.subr.mxu0 0.0
    %137 = vmatpush1.msra.mxu0 0.0
    %138 = vmatprep.subr.mxu0 0.0
    %139 = vmatpush1.msra.mxu0 0.0
    %140 = vmatprep.subr.mxu0 0.0
    %141 = vmatpush1.msra.mxu0 0.0
    %142 = vmatprep.subr.mxu0 0.0
    %143 = vmatpush1.msra.mxu0 0.0
    %144 = vmatprep.subr.mxu0 0.0
    %145 = vmatpush1.msra.mxu0 0.0
    %146 = vmatprep.subr.mxu0 0.0
    %147 = vmatpush1.msra.mxu0 0.0
    %148 = vmatprep.subr.mxu0 0.0
    %149 = vmatpush1.msra.mxu0 0.0
    %150 = vmatprep.subr.mxu0 0.0
    %151 = vmatpush1.msra.mxu0 0.0
    %152 = vmatprep.subr.mxu0 0.0
    %153 = vmatpush1.msra.mxu0 0.0
    %154 = vmatprep.subr.mxu0 0.0
    %155 = vmatpush1.msra.mxu0 0.0
    %156 = vmatprep.subr.mxu0 0.0
    %157 = vmatpush1.msra.mxu0 0.0
    %158 = vmatprep.mubr.f32.mxu0 0.0
    %159 = vmatmul.mubr.f32.gmra.mrb[0].mxu0 %v92
    %v160 = vpop.f32.mrb[0].mxu0
    %v161 = vadd.f32 %v88, %v160
    %v162 = vpop.f32.mrb[0].mxu0
    %163 = vdwg.mxu0
    %v164 = vmax.f32 %v161, 0.0
    %v165 = vld [vmem:[#allocation7] sm:$0xff]
    %v166 = vld [vmem:[#allocation7 + $0x8] sm:$0xff]
    %v167 = vld [vmem:[#allocation7 + $0x10] sm:$0xff]
    %v168 = vld [vmem:[#allocation7 + $0x18] sm:$0xff]
    %v169 = vld [vmem:[#allocation7 + $0x20] sm:$0xff]
    %v170 = vld [vmem:[#allocation7 + $0x28] sm:$0xff]
    %v171 = vld [vmem:[#allocation7 + $0x30] sm:$0xff]
    %v172 = vld [vmem:[#allocation7 + $0x38] sm:$0xff]
    %v173 = vld [vmem:[#allocation7 + $0x40] sm:$0xff]
    %v174 = vld [vmem:[#allocation7 + $0x48] sm:$0xff]
    %v175 = vld [vmem:[#allocation7 + $0x50] sm:$0xff]
    %v176 = vld [vmem:[#allocation7 + $0x58] sm:$0xff]
    %v177 = vld [vmem:[#allocation7 + $0x60] sm:$0xff]
    %v178 = vld [vmem:[#allocation7 + $0x68] sm:$0xff]
    %v179 = vld [vmem:[#allocation7 + $0x70] sm:$0xff]
    %v180 = vld [vmem:[#allocation7 + $0x78] sm:$0xff]
    %v181 = vld [vmem:[%s4] sm:$0xf]
    %v183 = vlaneseq
    %v184 = vshrl.u32 %v183, 7
    %v185 = vsub.s32 0, %v184
    %v186 = vrot.slane %v181, %v185
    %v187 = vlaneseq
    %v188 = vshrl.u32 %v187, 7
    %v189 = vsub.s32 1, %v188
    %v190 = vrot.slane %v181, %v189
    %v191 = vlaneseq
    %v192 = vshrl.u32 %v191, 7
    %v193 = vsub.s32 2, %v192
    %v194 = vrot.slane %v181, %v193
    %v195 = vlaneseq
    %v196 = vshrl.u32 %v195, 7
    %v197 = vsub.s32 3, %v196
    %v198 = vrot.slane %v181, %v197
    %vm203 = vcmask 261120
    %v205 = vsel %vm203, %v164, 0
    %207 = vmatprep.subr.mxu0 %v166
    %208 = vmatpush1.msra.mxu0 %v165
    %209 = vmatprep.subr.mxu0 %v170
    %210 = vmatpush1.msra.mxu0 %v169
    %211 = vmatprep.subr.mxu0 %v174
    %212 = vmatpush1.msra.mxu0 %v173
    %213 = vmatprep.subr.mxu0 %v178
    %214 = vmatpush1.msra.mxu0 %v177
    %215 = vmatprep.subr.mxu0 0.0
    %216 = vmatpush1.msra.mxu0 0.0
    %217 = vmatprep.subr.mxu0 0.0
    %218 = vmatpush1.msra.mxu0 0.0
    %219 = vmatprep.subr.mxu0 0.0
    %220 = vmatpush1.msra.mxu0 0.0
    %221 = vmatprep.subr.mxu0 0.0
    %222 = vmatpush1.msra.mxu0 0.0
    %223 = vmatprep.subr.mxu0 0.0
    %224 = vmatpush1.msra.mxu0 0.0
    %225 = vmatprep.subr.mxu0 0.0
    %226 = vmatpush1.msra.mxu0 0.0
    %227 = vmatprep.subr.mxu0 0.0
    %228 = vmatpush1.msra.mxu0 0.0
    %229 = vmatprep.subr.mxu0 0.0
    %230 = vmatpush1.msra.mxu0 0.0
    %231 = vmatprep.subr.mxu0 0.0
    %232 = vmatpush1.msra.mxu0 0.0
    %233 = vmatprep.subr.mxu0 0.0
    %234 = vmatpush1.msra.mxu0 0.0
    %235 = vmatprep.subr.mxu0 0.0
    %236 = vmatpush1.msra.mxu0 0.0
    %237 = vmatprep.subr.mxu0 0.0
    %238 = vmatpush1.msra.mxu0 0.0
    %239 = vmatprep.subr.mxu0 0.0
    %240 = vmatpush1.msra.mxu0 0.0
    %241 = vmatprep.subr.mxu0 0.0
    %242 = vmatpush1.msra.mxu0 0.0
    %243 = vmatprep.subr.mxu0 0.0
    %244 = vmatpush1.msra.mxu0 0.0
    %245 = vmatprep.subr.mxu0 0.0
    %246 = vmatpush1.msra.mxu0 0.0
    %247 = vmatprep.subr.mxu0 0.0
    %248 = vmatpush1.msra.mxu0 0.0
    %249 = vmatprep.subr.mxu0 0.0
    %250 = vmatpush1.msra.mxu0 0.0
    %251 = vmatprep.subr.mxu0 0.0
    %252 = vmatpush1.msra.mxu0 0.0
    %253 = vmatprep.subr.mxu0 0.0
    %254 = vmatpush1.msra.mxu0 0.0
    %255 = vmatprep.subr.mxu0 0.0
    %256 = vmatpush1.msra.mxu0 0.0
    %257 = vmatprep.subr.mxu0 0.0
    %258 = vmatpush1.msra.mxu0 0.0
    %259 = vmatprep.subr.mxu0 0.0
    %260 = vmatpush1.msra.mxu0 0.0
    %261 = vmatprep.subr.mxu0 0.0
    %262 = vmatpush1.msra.mxu0 0.0
    %263 = vmatprep.subr.mxu0 0.0
    %264 = vmatpush1.msra.mxu0 0.0
    %265 = vmatprep.subr.mxu0 0.0
    %266 = vmatpush1.msra.mxu0 0.0
    %267 = vmatprep.subr.mxu0 0.0
    %268 = vmatpush1.msra.mxu0 0.0
    %269 = vmatprep.subr.mxu0 0.0
    %270 = vmatpush1.msra.mxu0 0.0
    %271 = vmatprep.mubr.f32.mxu0 0.0
    %272 = vmatmul.mubr.f32.gmra.mrb[0].mxu0 %v205
    %v273 = vpop.f32.mrb[0].mxu0
    %v274 = vadd.f32 %v186, %v273
    %v275 = vpop.f32.mrb[0].mxu0
    %v276 = vadd.f32 %v190, %v275
    %277 = vdwg.mxu0
    %278 = vmatprep.subr.mxu0 %v168
    %279 = vmatpush1.msra.mxu0 %v167
    %280 = vmatprep.subr.mxu0 %v172
    %281 = vmatpush1.msra.mxu0 %v171
    %282 = vmatprep.subr.mxu0 %v176
    %283 = vmatpush1.msra.mxu0 %v175
    %284 = vmatprep.subr.mxu0 %v180
    %285 = vmatpush1.msra.mxu0 %v179
    %286 = vmatprep.subr.mxu0 0.0
    %287 = vmatpush1.msra.mxu0 0.0
    %288 = vmatprep.subr.mxu0 0.0
    %289 = vmatpush1.msra.mxu0 0.0
    %290 = vmatprep.subr.mxu0 0.0
    %291 = vmatpush1.msra.mxu0 0.0
    %292 = vmatprep.subr.mxu0 0.0
    %293 = vmatpush1.msra.mxu0 0.0
    %294 = vmatprep.subr.mxu0 0.0
    %295 = vmatpush1.msra.mxu0 0.0
    %296 = vmatprep.subr.mxu0 0.0
    %297 = vmatpush1.msra.mxu0 0.0
    %298 = vmatprep.subr.mxu0 0.0
    %299 = vmatpush1.msra.mxu0 0.0
    %300 = vmatprep.subr.mxu0 0.0
    %301 = vmatpush1.msra.mxu0 0.0
    %302 = vmatprep.subr.mxu0 0.0
    %303 = vmatpush1.msra.mxu0 0.0
    %304 = vmatprep.subr.mxu0 0.0
    %305 = vmatpush1.msra.mxu0 0.0
    %306 = vmatprep.subr.mxu0 0.0
    %307 = vmatpush1.msra.mxu0 0.0
    %308 = vmatprep.subr.mxu0 0.0
    %309 = vmatpush1.msra.mxu0 0.0
    %310 = vmatprep.subr.mxu0 0.0
    %311 = vmatpush1.msra.mxu0 0.0
    %312 = vmatprep.subr.mxu0 0.0
    %313 = vmatpush1.msra.mxu0 0.0
    %314 = vmatprep.subr.mxu0 0.0
    %315 = vmatpush1.msra.mxu0 0.0
    %316 = vmatprep.subr.mxu0 0.0
    %317 = vmatpush1.msra.mxu0 0.0
    %318 = vmatprep.subr.mxu0 0.0
    %319 = vmatpush1.msra.mxu0 0.0
    %320 = vmatprep.subr.mxu0 0.0
    %321 = vmatpush1.msra.mxu0 0.0
    %322 = vmatprep.subr.mxu0 0.0
    %323 = vmatpush1.msra.mxu0 0.0
    %324 = vmatprep.subr.mxu0 0.0
    %325 = vmatpush1.msra.mxu0 0.0
    %326 = vmatprep.subr.mxu0 0.0
    %327 = vmatpush1.msra.mxu0 0.0
    %328 = vmatprep.subr.mxu0 0.0
    %329 = vmatpush1.msra.mxu0 0.0
    %330 = vmatprep.subr.mxu0 0.0
    %331 = vmatpush1.msra.mxu0 0.0
    %332 = vmatprep.subr.mxu0 0.0
    %333 = vmatpush1.msra.mxu0 0.0
    %334 = vmatprep.subr.mxu0 0.0
    %335 = vmatpush1.msra.mxu0 0.0
    %336 = vmatprep.subr.mxu0 0.0
    %337 = vmatpush1.msra.mxu0 0.0
    %338 = vmatprep.subr.mxu0 0.0
    %339 = vmatpush1.msra.mxu0 0.0
    %340 = vmatprep.subr.mxu0 0.0
    %341 = vmatpush1.msra.mxu0 0.0
    %342 = vmatprep.mubr.f32.mxu0 0.0
    %343 = vmatmul.mubr.f32.gmra.mrb[0].mxu0 %v205
    %v344 = vpop.f32.mrb[0].mxu0
    %v345 = vadd.f32 %v194, %v344
    %v346 = vpop.f32.mrb[0].mxu0
    %v347 = vadd.f32 %v198, %v346
    %348 = vdwg.mxu0
    %v349 = vmax.f32 %v274, 0.0
    %v350 = vmax.f32 %v276, 0.0
    %v351 = vmax.f32 %v345, 0.0
    %v352 = vmax.f32 %v347, 0.0
    %v353 = vld [vmem:[#allocation8] sm:$0xff]
    %v354 = vld [vmem:[#allocation8 + $0x8] sm:$0xff]
    %v355 = vld [vmem:[#allocation8 + $0x10] sm:$0xff]
    %v356 = vld [vmem:[#allocation8 + $0x18] sm:$0xff]
    %v357 = vld [vmem:[#allocation8 + $0x20] sm:$0xff]
    %v358 = vld [vmem:[#allocation8 + $0x28] sm:$0xff]
    %v359 = vld [vmem:[#allocation8 + $0x30] sm:$0xff]
    %v360 = vld [vmem:[#allocation8 + $0x38] sm:$0xff]
    %v361 = vld [vmem:[#allocation8 + $0x40] sm:$0xff]
    %v362 = vld [vmem:[#allocation8 + $0x48] sm:$0xff]
    %v363 = vld [vmem:[#allocation8 + $0x50] sm:$0xff]
    %v364 = vld [vmem:[#allocation8 + $0x58] sm:$0xff]
    %v365 = vld [vmem:[#allocation8 + $0x60] sm:$0xff]
    %v366 = vld [vmem:[#allocation8 + $0x68] sm:$0xff]
    %v367 = vld [vmem:[#allocation8 + $0x70] sm:$0xff]
    %v368 = vld [vmem:[#allocation8 + $0x78] sm:$0xff]
    %v369 = vld [vmem:[#allocation8 + $0x80] sm:$0xff]
    %v370 = vld [vmem:[#allocation8 + $0x88] sm:$0xff]
    %v371 = vld [vmem:[#allocation8 + $0x90] sm:$0xff]
    %v372 = vld [vmem:[#allocation8 + $0x98] sm:$0xff]
    %v373 = vld [vmem:[#allocation8 + $0xa0] sm:$0xff]
    %v374 = vld [vmem:[#allocation8 + $0xa8] sm:$0xff]
    %v375 = vld [vmem:[#allocation8 + $0xb0] sm:$0xff]
    %v376 = vld [vmem:[#allocation8 + $0xb8] sm:$0xff]
    %v377 = vld [vmem:[#allocation8 + $0xc0] sm:$0xff]
    %v378 = vld [vmem:[#allocation8 + $0xc8] sm:$0xff]
    %v379 = vld [vmem:[#allocation8 + $0xd0] sm:$0xff]
    %v380 = vld [vmem:[#allocation8 + $0xd8] sm:$0xff]
    %v381 = vld [vmem:[#allocation8 + $0xe0] sm:$0xff]
    %v382 = vld [vmem:[#allocation8 + $0xe8] sm:$0xff]
    %v383 = vld [vmem:[#allocation8 + $0xf0] sm:$0xff]
    %v384 = vld [vmem:[#allocation8 + $0xf8] sm:$0xff]
    %v385 = vld [vmem:[#allocation8 + $0x100] sm:$0xff]
    %v386 = vld [vmem:[#allocation8 + $0x108] sm:$0xff]
    %v387 = vld [vmem:[#allocation8 + $0x110] sm:$0xff]
    %v388 = vld [vmem:[#allocation8 + $0x118] sm:$0xff]
    %v389 = vld [vmem:[#allocation8 + $0x120] sm:$0xff]
    %v390 = vld [vmem:[#allocation8 + $0x128] sm:$0xff]
    %v391 = vld [vmem:[#allocation8 + $0x130] sm:$0xff]
    %v392 = vld [vmem:[#allocation8 + $0x138] sm:$0xff]
    %v393 = vld [vmem:[#allocation8 + $0x140] sm:$0xff]
    %v394 = vld [vmem:[#allocation8 + $0x148] sm:$0xff]
    %v395 = vld [vmem:[#allocation8 + $0x150] sm:$0xff]
    %v396 = vld [vmem:[#allocation8 + $0x158] sm:$0xff]
    %v397 = vld [vmem:[#allocation8 + $0x160] sm:$0xff]
    %v398 = vld [vmem:[#allocation8 + $0x168] sm:$0xff]
    %v399 = vld [vmem:[#allocation8 + $0x170] sm:$0xff]
    %v400 = vld [vmem:[#allocation8 + $0x178] sm:$0xff]
    %v401 = vld [vmem:[#allocation8 + $0x180] sm:$0xff]
    %v402 = vld [vmem:[#allocation8 + $0x188] sm:$0xff]
    %v403 = vld [vmem:[#allocation8 + $0x190] sm:$0xff]
    %v404 = vld [vmem:[#allocation8 + $0x198] sm:$0xff]
    %v405 = vld [vmem:[#allocation8 + $0x1a0] sm:$0xff]
    %v406 = vld [vmem:[#allocation8 + $0x1a8] sm:$0xff]
    %v407 = vld [vmem:[#allocation8 + $0x1b0] sm:$0xff]
    %v408 = vld [vmem:[#allocation8 + $0x1b8] sm:$0xff]
    %v409 = vld [vmem:[#allocation8 + $0x1c0] sm:$0xff]
    %v410 = vld [vmem:[#allocation8 + $0x1c8] sm:$0xff]
    %v411 = vld [vmem:[#allocation8 + $0x1d0] sm:$0xff]
    %v412 = vld [vmem:[#allocation8 + $0x1d8] sm:$0xff]
    %v413 = vld [vmem:[#allocation8 + $0x1e0] sm:$0xff]
    %v414 = vld [vmem:[#allocation8 + $0x1e8] sm:$0xff]
    %v415 = vld [vmem:[#allocation8 + $0x1f0] sm:$0xff]
    %v416 = vld [vmem:[#allocation8 + $0x1f8] sm:$0xff]
    %v417 = vld [vmem:[%s6] sm:$0x1]
    %v419 = vlaneseq
    %v420 = vshrl.u32 %v419, 7
    %v421 = vsub.s32 0, %v420
    %v422 = vrot.slane %v417, %v421
    %424 = vmatprep.subr.mxu0 0.0
    %425 = vmatpush1.msra.mxu0 %v353
    %426 = vmatprep.subr.mxu0 0.0
    %427 = vmatpush1.msra.mxu0 %v354
    %428 = vmatprep.subr.mxu0 0.0
    %429 = vmatpush1.msra.mxu0 %v355
    %430 = vmatprep.subr.mxu0 0.0
    %431 = vmatpush1.msra.mxu0 %v356
    %432 = vmatprep.subr.mxu0 0.0
    %433 = vmatpush1.msra.mxu0 %v357
    %434 = vmatprep.subr.mxu0 0.0
    %435 = vmatpush1.msra.mxu0 %v358
    %436 = vmatprep.subr.mxu0 0.0
    %437 = vmatpush1.msra.mxu0 %v359
    %438 = vmatprep.subr.mxu0 0.0
    %439 = vmatpush1.msra.mxu0 %v360
    %440 = vmatprep.subr.mxu0 0.0
    %441 = vmatpush1.msra.mxu0 %v361
    %442 = vmatprep.subr.mxu0 0.0
    %443 = vmatpush1.msra.mxu0 %v362
    %444 = vmatprep.subr.mxu0 0.0
    %445 = vmatpush1.msra.mxu0 %v363
    %446 = vmatprep.subr.mxu0 0.0
    %447 = vmatpush1.msra.mxu0 %v364
    %448 = vmatprep.subr.mxu0 0.0
    %449 = vmatpush1.msra.mxu0 %v365
    %450 = vmatprep.subr.mxu0 0.0
    %451 = vmatpush1.msra.mxu0 %v366
    %452 = vmatprep.subr.mxu0 0.0
    %453 = vmatpush1.msra.mxu0 %v367
    %454 = vmatprep.subr.mxu0 0.0
    %455 = vmatpush1.msra.mxu0 %v368
    %456 = vmatprep.subr.mxu0 0.0
    %457 = vmatpush1.msra.mxu0 %v369
    %458 = vmatprep.subr.mxu0 0.0
    %459 = vmatpush1.msra.mxu0 %v370
    %460 = vmatprep.subr.mxu0 0.0
    %461 = vmatpush1.msra.mxu0 %v371
    %462 = vmatprep.subr.mxu0 0.0
    %463 = vmatpush1.msra.mxu0 %v372
    %464 = vmatprep.subr.mxu0 0.0
    %465 = vmatpush1.msra.mxu0 %v373
    %466 = vmatprep.subr.mxu0 0.0
    %467 = vmatpush1.msra.mxu0 %v374
    %468 = vmatprep.subr.mxu0 0.0
    %469 = vmatpush1.msra.mxu0 %v375
    %470 = vmatprep.subr.mxu0 0.0
    %471 = vmatpush1.msra.mxu0 %v376
    %472 = vmatprep.subr.mxu0 0.0
    %473 = vmatpush1.msra.mxu0 %v377
    %474 = vmatprep.subr.mxu0 0.0
    %475 = vmatpush1.msra.mxu0 %v378
    %476 = vmatprep.subr.mxu0 0.0
    %477 = vmatpush1.msra.mxu0 %v379
    %478 = vmatprep.subr.mxu0 0.0
    %479 = vmatpush1.msra.mxu0 %v380
    %480 = vmatprep.subr.mxu0 0.0
    %481 = vmatpush1.msra.mxu0 %v381
    %482 = vmatprep.subr.mxu0 0.0
    %483 = vmatpush1.msra.mxu0 %v382
    %484 = vmatprep.subr.mxu0 0.0
    %485 = vmatpush1.msra.mxu0 %v383
    %486 = vmatprep.subr.mxu0 0.0
    %487 = vmatpush1.msra.mxu0 %v384
    %488 = vmatprep.mubr.f32.mxu0 %v350
    %489 = vmatmul.mubr.f32.gmra.mrb[0].mxu0 %v349
    %v490 = vpop.f32.mrb[0].mxu0
    %v491 = vadd.f32 %v422, %v490
    %v492 = vpop.f32.mrb[0].mxu0
    %493 = vdwg.mxu0
    %494 = vmatprep.subr.mxu0 0.0
    %495 = vmatpush1.msra.mxu0 %v385
    %496 = vmatprep.subr.mxu0 0.0
    %497 = vmatpush1.msra.mxu0 %v386
    %498 = vmatprep.subr.mxu0 0.0
    %499 = vmatpush1.msra.mxu0 %v387
    %500 = vmatprep.subr.mxu0 0.0
    %501 = vmatpush1.msra.mxu0 %v388
    %502 = vmatprep.subr.mxu0 0.0
    %503 = vmatpush1.msra.mxu0 %v389
    %504 = vmatprep.subr.mxu0 0.0
    %505 = vmatpush1.msra.mxu0 %v390
    %506 = vmatprep.subr.mxu0 0.0
    %507 = vmatpush1.msra.mxu0 %v391
    %508 = vmatprep.subr.mxu0 0.0
    %509 = vmatpush1.msra.mxu0 %v392
    %510 = vmatprep.subr.mxu0 0.0
    %511 = vmatpush1.msra.mxu0 %v393
    %512 = vmatprep.subr.mxu0 0.0
    %513 = vmatpush1.msra.mxu0 %v394
    %514 = vmatprep.subr.mxu0 0.0
    %515 = vmatpush1.msra.mxu0 %v395
    %516 = vmatprep.subr.mxu0 0.0
    %517 = vmatpush1.msra.mxu0 %v396
    %518 = vmatprep.subr.mxu0 0.0
    %519 = vmatpush1.msra.mxu0 %v397
    %520 = vmatprep.subr.mxu0 0.0
    %521 = vmatpush1.msra.mxu0 %v398
    %522 = vmatprep.subr.mxu0 0.0
    %523 = vmatpush1.msra.mxu0 %v399
    %524 = vmatprep.subr.mxu0 0.0
    %525 = vmatpush1.msra.mxu0 %v400
    %526 = vmatprep.subr.mxu0 0.0
    %527 = vmatpush1.msra.mxu0 %v401
    %528 = vmatprep.subr.mxu0 0.0
    %529 = vmatpush1.msra.mxu0 %v402
    %530 = vmatprep.subr.mxu0 0.0
    %531 = vmatpush1.msra.mxu0 %v403
    %532 = vmatprep.subr.mxu0 0.0
    %533 = vmatpush1.msra.mxu0 %v404
    %534 = vmatprep.subr.mxu0 0.0
    %535 = vmatpush1.msra.mxu0 %v405
    %536 = vmatprep.subr.mxu0 0.0
    %537 = vmatpush1.msra.mxu0 %v406
    %538 = vmatprep.subr.mxu0 0.0
    %539 = vmatpush1.msra.mxu0 %v407
    %540 = vmatprep.subr.mxu0 0.0
    %541 = vmatpush1.msra.mxu0 %v408
    %542 = vmatprep.subr.mxu0 0.0
    %543 = vmatpush1.msra.mxu0 %v409
    %544 = vmatprep.subr.mxu0 0.0
    %545 = vmatpush1.msra.mxu0 %v410
    %546 = vmatprep.subr.mxu0 0.0
    %547 = vmatpush1.msra.mxu0 %v411
    %548 = vmatprep.subr.mxu0 0.0
    %549 = vmatpush1.msra.mxu0 %v412
    %550 = vmatprep.subr.mxu0 0.0
    %551 = vmatpush1.msra.mxu0 %v413
    %552 = vmatprep.subr.mxu0 0.0
    %553 = vmatpush1.msra.mxu0 %v414
    %554 = vmatprep.subr.mxu0 0.0
    %555 = vmatpush1.msra.mxu0 %v415
    %556 = vmatprep.subr.mxu0 0.0
    %557 = vmatpush1.msra.mxu0 %v416
    %558 = vmatprep.mubr.f32.mxu0 %v352
    %559 = vmatmul.mubr.f32.gmra.mrb[0].mxu0 %v351
    %v560 = vpop.f32.mrb[0].mxu0
    %v561 = vadd.f32 %v491, %v560
    %v562 = vpop.f32.mrb[0].mxu0
    %563 = vdwg.mxu0
    %564 = vst [vmem:[#allocation10] sm:$0xff] %v561
    // Predicated region
    $region46: #{tpu_custom_call.1} parent=1 // pred_check
      _
    $region47: #{tpu_custom_call.1} parent=1 // pred_check_branch
      %566 = sbr.rel (0) target = $region49
    $region48: #{tpu_custom_call.1} parent=1 // pred_region
      %s568 = ssub.s32 128, 128
      %569 = vsyncadd [#allocation4], %s568
      %s571 = sshll.u32 [#allocation10], 4
      %s572 = int_to_ptr.vmem [resolvable:$true] %s571
      %574 = dma.vmem_to_hbm [thread:$0]  %s572, 128, %s7, [#allocation4]
    $region49: #{tpu_custom_call.1} parent=1 // pred_fallthru
      _
    // Predicated region
    $region50: #{tpu_custom_call.1} parent=1 // pred_check
      _
    $region51: #{tpu_custom_call.1} parent=1 // pred_check_branch
      %576 = sbr.rel (0) target = $region53
    $region52: #{tpu_custom_call.1} parent=1 // pred_region
      %577 = dma.done [#allocation4], 128
    $region53: #{tpu_custom_call.1} parent=1 // pred_fallthru
      _
    %578 = vsyncpa [#allocation3], 1
    %579 = vsyncpa [#allocation6], 1
    %580 = vsyncpa [#allocation9], 1
    %581 = vsyncpa [#allocation4], 1

</llo_original>
